<compile_context>
chip_gen: v7x
topology: tpu7x:2x2x1
jax: 0.10.0
libtpu: 0.0.40
codegen_flags: <defaults>
</compile_context>

<pallas_src>
import jax
import jax.numpy as jnp
from jax.experimental import pallas as pl
from jax.experimental.pallas import tpu as pltpu
import numpy as np


def _cdiv(a, b):
    return -(-a // b)


def _round_up(x, m):
    return _cdiv(x, m) * m


def _sublanes(dtype):
    # Sub-32-bit dtypes pack along sublanes: 8 rows for f32, 16 bf16, 32 int8.
    return max(8, 32 // jnp.dtype(dtype).itemsize)


def _chip_vmem_info():
    """Returns (vmem_capacity_bytes, num_tensorcores) with safe fallbacks."""
    vmem_cap = 64 * 1024 * 1024                      # conservative (v7x-sized)
    try:
        info = pltpu.get_tpu_info()
        cap = int(getattr(info, "vmem_capacity_bytes", 0) or 0)
        if cap > 0:
            vmem_cap = cap
    except Exception:
        pass
    # Heuristic: v7x has 64 MiB VMEM per core but 2 TensorCores; v5e/v6e 128 MiB / 1 TC.
    num_tc = 2 if vmem_cap <= 64 * 1024 * 1024 else 1
    return vmem_cap, num_tc


def _pad_width(xb, pad_l, pad_r, mode, value):
    """Width (lane-axis) padding: xb[..., W] -> [..., W + pad_l + pad_r]."""
    if pad_l == 0 and pad_r == 0:
        return xb
    W = xb.shape[-1]
    lead = xb.shape[:-1]
    parts = []
    if pad_l:
        if mode == "constant":
            parts.append(jnp.full(lead + (pad_l,), value, xb.dtype))
        elif mode == "replicate":
            parts.append(jnp.broadcast_to(xb[..., 0:1], lead + (pad_l,)))
        else:  # reflect: columns pad_l .. 1 (pads are tiny; static 1-col slices)
            parts.extend(xb[..., i:i + 1] for i in range(pad_l, 0, -1))
    parts.append(xb)
    if pad_r:
        if mode == "constant":
            parts.append(jnp.full(lead + (pad_r,), value, xb.dtype))
        elif mode == "replicate":
            parts.append(jnp.broadcast_to(xb[..., W - 1:W], lead + (pad_r,)))
        else:  # reflect: columns W-2 .. W-1-pad_r
            parts.extend(xb[..., W - 2 - i:W - 1 - i] for i in range(pad_r))
    return parts[0] if len(parts) == 1 else jnp.concatenate(parts, axis=-1)


def pad2d(x, pad, mode, value=0.0, *, _tile_budget_bytes=None):
    """Equivalent of torch.nn.functional.pad(x, pad=pad, mode=mode) for NCHW x."""
    if len(pad) != 4:
        raise ValueError("pad must be (left, right, top, bottom)")
    pad_l, pad_r, pad_t, pad_b = (int(p) for p in pad)
    if min(pad_l, pad_r, pad_t, pad_b) < 0:
        raise ValueError("negative padding is not supported")
    if mode not in ("constant", "replicate", "reflect"):
        raise ValueError(f"unsupported pad mode: {mode}")

    N, C, H, W = x.shape
    Hp = H + pad_t + pad_b
    Wp = W + pad_l + pad_r

    if mode == "reflect":
        if pad_l >= W or pad_r >= W or pad_t >= H or pad_b >= H:
            raise ValueError(
                "reflect padding must be smaller than the corresponding dimension")

    itemsize = jnp.dtype(x.dtype).itemsize
    sub = _sublanes(x.dtype)

    # ---------------- per-generation VMEM budgets ----------------
    vmem_cap, num_tc = _chip_vmem_info()
    tile_budget = (vmem_cap // 8) * 5            # ~80 MiB v5e/v6e, ~40 MiB v7x
    vmem_limit = (vmem_cap // 4) * 3             # ~96 MiB v5e/v6e, ~48 MiB v7x
    if _tile_budget_bytes is not None:           # test / debug override
        tile_budget = int(_tile_budget_bytes)

    # ---------------- real (tile-padded) per-channel footprint ----------------
    def _tiled_bytes(h, w):
        return _round_up(max(h, 1), sub) * _round_up(max(w, 1), 128) * itemsize

    in_c = _tiled_bytes(H, W)
    out_c = _tiled_bytes(Hp, Wp)
    yw_c = 0 if mode == "constant" else _tiled_bytes(H, Wp)   # width-padded temp
    per_chan = 2 * in_c + 2 * out_c + yw_c       # double-buffered in/out + temp

    cost = pl.CostEstimate(
        flops=0, transcendentals=0,
        bytes_accessed=N * C * (H * W + Hp * Wp) * itemsize)

    if per_chan <= tile_budget or H < sub:
        # ============ channel-blocked path: one (1, c_blk, H, W) DMA per step ============
        c_blk = max(1, min(C, tile_budget // per_chan)) if per_chan <= tile_budget else 1
        if num_tc > 1 and C > 1 and N < num_tc:
            # v7x: give each TensorCore at least one block; shrink just enough.
            needed_c_blocks = _cdiv(num_tc, N)
            if _cdiv(C, c_blk) < needed_c_blocks:
                c_blk = _cdiv(C, min(C, needed_c_blocks))

        def kernel(x_ref, o_ref):
            xb = x_ref[...]                                    # (1, c_blk, H, W)
            if mode == "constant":
                # Fast path: dense fill of the whole block, then store the input
                # plane into the interior window (no concat, no temporaries).
                o_ref[...] = jnp.full((1, c_blk, Hp, Wp), value, xb.dtype)
                o_ref[:, :, pad_t:pad_t + H, pad_l:pad_l + W] = xb
                return
            # replicate / reflect: width-pad + store interior rows first ...
            o_ref[:, :, pad_t:pad_t + H, :] = _pad_width(xb, pad_l, pad_r, mode, value)
            # ... then rebuild the H borders from rows already sitting in o_ref
            # (keeps the width-padded temporary's live range short).
            if pad_t:
                if mode == "replicate":
                    top = jnp.broadcast_to(o_ref[:, :, pad_t:pad_t + 1, :],
                                           (1, c_blk, pad_t, Wp))
                else:   # reflect: out row j (< pad_t) <- interior row pad_t - j
                    rows = [o_ref[:, :, 2 * pad_t - j:2 * pad_t - j + 1, :]
                            for j in range(pad_t)]
                    top = rows[0] if len(rows) == 1 else jnp.concatenate(rows, axis=2)
                o_ref[:, :, 0:pad_t, :] = top
            if pad_b:
                last = pad_t + H - 1
                if mode == "replicate":
                    bot = jnp.broadcast_to(o_ref[:, :, last:last + 1, :],
                                           (1, c_blk, pad_b, Wp))
                else:   # reflect: out row pad_t+H+k <- interior row H-2-k
                    rows = [o_ref[:, :, last - 1 - k:last - k, :]
                            for k in range(pad_b)]
                    bot = rows[0] if len(rows) == 1 else jnp.concatenate(rows, axis=2)
                o_ref[:, :, pad_t + H:Hp, :] = bot

        return pl.pallas_call(
            kernel,
            out_shape=jax.ShapeDtypeStruct((N, C, Hp, Wp), x.dtype),
            grid=(N, _cdiv(C, c_blk)),
            in_specs=[pl.BlockSpec((1, c_blk, H, W), lambda n, c: (n, c, 0, 0))],
            out_specs=pl.BlockSpec((1, c_blk, Hp, Wp), lambda n, c: (n, c, 0, 0)),
            compiler_params=pltpu.CompilerParams(
                dimension_semantics=("parallel", "parallel"),
                vmem_limit_bytes=int(vmem_limit)),
            cost_estimate=cost,
        )(x)

    # ============ row-tiled fallback: single plane exceeds the VMEM budget ============
    # Grid over aligned output row blocks; the needed input rows are fetched
    # manually from HBM as a clamped tile_h-high window.
    lane_w = _round_up(W, 128) * itemsize
    lane_wp = _round_up(Wp, 128) * itemsize
    per_sub = sub * (2 * lane_wp + lane_w + (0 if mode == "constant" else lane_wp))
    tile_h = max(sub, (tile_budget // max(1, per_sub)) * sub)
    if mode == "reflect":
        tile_h = max(tile_h, _round_up(max(pad_t, pad_b) + 1, sub))
    tile_h = min(tile_h, (H // sub) * sub)        # input window must fit in the plane
    if tile_h < sub or (mode == "reflect" and tile_h <= max(pad_t, pad_b)):
        raise NotImplementedError(
            "row-tiled pad fallback requires H >= sublane tile and pads < tile_h")

    def row_kernel(x_hbm, o_ref, x_vmem):
        n, c, r = pl.program_id(0), pl.program_id(1), pl.program_id(2)
        row0 = r * tile_h                                 # first output row of the block
        s = jnp.clip(row0 - pad_t, 0, H - tile_h)         # clamped input window start
        pltpu.sync_copy(x_hbm.at[n, c, pl.ds(s, tile_h), :], x_vmem)

        pure_interior = jnp.logical_and(row0 >= pad_t, row0 + tile_h <= pad_t + H)

        @pl.when(pure_interior)
        def _():  # identity row mapping: width-pad the whole window at once
            o_ref[...] = _pad_width(x_vmem[...], pad_l, pad_r, mode, value)

        @pl.when(jnp.logical_not(pure_interior))
        def _():  # blocks touching the top/bottom borders: per-row remap
            @pl.loop(0, tile_h)
            def _(j):
                t = row0 + j - pad_t                      # source input row index
                if mode == "reflect":
                    g = (H - 1) - jnp.abs((H - 1) - jnp.abs(t))
                else:
                    g = jnp.clip(t, 0, H - 1)
                local = jnp.clip(g - s, 0, tile_h - 1)
                roww = _pad_width(x_vmem[pl.ds(local, 1), :], pad_l, pad_r, mode, value)
                if mode == "constant":
                    inb = jnp.logical_and(t >= 0, t < H)
                    roww = jnp.where(inb, roww, jnp.full_like(roww, value))
                o_ref[pl.ds(j, 1), :] = roww              # rows past Hp are dropped

    return pl.pallas_call(
        row_kernel,
        out_shape=jax.ShapeDtypeStruct((N, C, Hp, Wp), x.dtype),
        grid=(N, C, _cdiv(Hp, tile_h)),
        in_specs=[pl.BlockSpec(memory_space=pl.ANY)],
        out_specs=pl.BlockSpec((None, None, tile_h, Wp), lambda n, c, r: (n, c, r, 0)),
        scratch_shapes=[pltpu.VMEM((tile_h, W), x.dtype)],
        compiler_params=pltpu.CompilerParams(
            dimension_semantics=("parallel", "parallel", "arbitrary"),
            vmem_limit_bytes=int(vmem_limit)),
        cost_estimate=cost,
    )(x)


class Pad2D:
    """JAX/Pallas port of the PyTorch Pad2D module."""

    def __init__(self, pad, mode, value=0.0):
        self.pad = tuple(pad)
        self.mode = mode
        self.value = value  # note: cast to x.dtype for integer inputs (torch-like)

    def __call__(self, x):
        return pad2d(x, self.pad, self.mode, self.value)


if __name__ == "__main__":
    key = jax.random.PRNGKey(0)
    x = jax.random.normal(key, (2, 4, 16, 16), dtype=jnp.float32)

    pad = (1, 2, 1, 2)  # PyTorch order: (left, right, top, bottom)
    np_modes = {"replicate": "edge", "reflect": "reflect", "constant": "constant"}

    for mode in ("replicate", "constant", "reflect"):
        ref = jnp.pad(
            x, ((0, 0), (0, 0), (pad[2], pad[3]), (pad[0], pad[1])),
            mode=np_modes[mode])

        # Channel-blocked main path.
        out = jax.block_until_ready(Pad2D(pad=pad, mode=mode)(x))
        assert out.shape == (2, 4, 19, 19)
        np.testing.assert_allclose(np.asarray(out), np.asarray(ref), rtol=0, atol=0)

        # Row-tiled fallback path (forced via a tiny tile budget so it gets
        # exercised/validated even at small shapes).
        out2 = jax.block_until_ready(pad2d(x, pad, mode, _tile_budget_bytes=1))
        assert out2.shape == (2, 4, 19, 19)
        np.testing.assert_allclose(np.asarray(out2), np.asarray(ref), rtol=0, atol=0)

    print("KERNEL_OK")
</pallas_src>

<mosaic_0001>
module attributes {stable_mosaic.version = 11 : i64} {
  func.func @kernel(%arg0: i32, %arg1: i32, %arg2: memref<1x4x16x16xf32, #tpu.memory_space<vmem>>, %arg3: memref<1x4x19x19xf32, #tpu.memory_space<vmem>>) attributes {dimension_semantics = [#tpu.dimension_semantics<parallel>, #tpu.dimension_semantics<parallel>], iteration_bounds = array<i64: 2, 1>, scalar_prefetch = 0 : i64, scratch_operands = 0 : i64, tpu.core_type = #tpu.core_type<tc>, window_params = [{transform_indices = @transform_0, window_bounds = array<i64: 1, 4, 16, 16>}, {transform_indices = @transform_1, window_bounds = array<i64: 1, 4, 19, 19>}]} {
    %c0 = arith.constant 0 : index
    %c0_0 = arith.constant 0 : index
    %c0_1 = arith.constant 0 : index
    %c0_2 = arith.constant 0 : index
    %0 = vector.load %arg2[%c0, %c0_0, %c0_1, %c0_2] : memref<1x4x16x16xf32, #tpu.memory_space<vmem>>, vector<1x4x16x16xf32>
    %1 = vector.extract_strided_slice %0 {offsets = [0, 0, 0, 0], sizes = [1, 4, 16, 1], strides = [1, 1, 1, 1]} : vector<1x4x16x16xf32> to vector<1x4x16x1xf32>
    %2 = vector.extract_strided_slice %0 {offsets = [0, 0, 0, 15], sizes = [1, 4, 16, 1], strides = [1, 1, 1, 1]} : vector<1x4x16x16xf32> to vector<1x4x16x1xf32>
    %3 = vector.shape_cast %2 : vector<1x4x16x1xf32> to vector<1x4x16x1xf32>
    %4 = vector.broadcast %3 : vector<1x4x16x1xf32> to vector<1x4x16x2xf32>
    %5 = tpu.concatenate %1, %0, %4 in 3 : vector<1x4x16x1xf32>, vector<1x4x16x16xf32>, vector<1x4x16x2xf32> -> vector<1x4x16x19xf32>
    %c0_3 = arith.constant 0 : index
    %c0_4 = arith.constant 0 : index
    %c1 = arith.constant 1 : index
    %c0_5 = arith.constant 0 : index
    %6 = vector.load %arg3[%c0_3, %c0_4, %c1, %c0_5] : memref<1x4x19x19xf32, #tpu.memory_space<vmem>>, vector<1x4x16x19xf32>
    tpu.vector_store %arg3[%c0_3, %c0_4, %c1, %c0_5], %5 {strides = array<i32>} : memref<1x4x19x19xf32, #tpu.memory_space<vmem>>, vector<1x4x16x19xf32>,
    %c0_6 = arith.constant 0 : index
    %c0_7 = arith.constant 0 : index
    %c1_8 = arith.constant 1 : index
    %c0_9 = arith.constant 0 : index
    %7 = vector.load %arg3[%c0_6, %c0_7, %c1_8, %c0_9] : memref<1x4x19x19xf32, #tpu.memory_space<vmem>>, vector<1x4x1x19xf32>
    %c0_10 = arith.constant 0 : index
    %c0_11 = arith.constant 0 : index
    %c0_12 = arith.constant 0 : index
    %c0_13 = arith.constant 0 : index
    %8 = vector.load %arg3[%c0_10, %c0_11, %c0_12, %c0_13] : memref<1x4x19x19xf32, #tpu.memory_space<vmem>>, vector<1x4x1x19xf32>
    tpu.vector_store %arg3[%c0_10, %c0_11, %c0_12, %c0_13], %7 {strides = array<i32>} : memref<1x4x19x19xf32, #tpu.memory_space<vmem>>, vector<1x4x1x19xf32>,
    %c0_14 = arith.constant 0 : index
    %c0_15 = arith.constant 0 : index
    %c16 = arith.constant 16 : index
    %c0_16 = arith.constant 0 : index
    %9 = vector.load %arg3[%c0_14, %c0_15, %c16, %c0_16] : memref<1x4x19x19xf32, #tpu.memory_space<vmem>>, vector<1x4x1x19xf32>
    %10 = vector.shape_cast %9 : vector<1x4x1x19xf32> to vector<1x4x1x19xf32>
    %11 = vector.broadcast %10 : vector<1x4x1x19xf32> to vector<1x4x2x19xf32>
    %c0_17 = arith.constant 0 : index
    %c0_18 = arith.constant 0 : index
    %c17 = arith.constant 17 : index
    %c0_19 = arith.constant 0 : index
    %12 = vector.load %arg3[%c0_17, %c0_18, %c17, %c0_19] : memref<1x4x19x19xf32, #tpu.memory_space<vmem>>, vector<1x4x2x19xf32>
    tpu.vector_store %arg3[%c0_17, %c0_18, %c17, %c0_19], %11 {strides = array<i32>} : memref<1x4x19x19xf32, #tpu.memory_space<vmem>>, vector<1x4x2x19xf32>,
    return
  }
  func.func @transform_0(%arg0: i32, %arg1: i32) -> (i32, i32, i32, i32) {
    %c0_i32 = arith.constant 0 : i32
    %c0_i32_0 = arith.constant 0 : i32
    %c0_i32_1 = arith.constant 0 : i32
    return %arg0, %arg1, %c0_i32, %c0_i32_0 : i32, i32, i32, i32
  }
  func.func @transform_1(%arg0: i32, %arg1: i32) -> (i32, i32, i32, i32) {
    %c0_i32 = arith.constant 0 : i32
    %c0_i32_0 = arith.constant 0 : i32
    %c0_i32_1 = arith.constant 0 : i32
    return %arg0, %arg1, %c0_i32, %c0_i32_0 : i32, i32, i32, i32
  }
}

</mosaic_0001>

<llo_original>
// kernel: tpu_custom_call.1
$region0: #{tpu_custom_call.1}
  #allocation0 [shape = 'u32[]', space=smem, size = 0x4, offset = 0x4, fixed_abs, tag = 'smem constant byte address 0x4 - core index']
  #allocation1 [shape = 'u32[144,128]{1,0:T(1,128)}', space=vmem, size = 0x12000, scoped, tag = 'internal scratch']
  %s0 = inlined_call_operand.hbm [shape: f32[2,4,16,16], index: 0, kind: input, shape index: {}]
  %s1 = inlined_call_operand.vmem [shape: f32[2,4,19,19], index: 1, kind: output, shape index: {}]
  %s2 = sld [smem:[#allocation0]]
  $region41: #{tpu_custom_call.1} parent=0
    _
  %s4 = ssub.s32 1, %s2
  %s5 = scalar_select 0, %s4, %s2
  $region1: #{tpu_custom_call.1} parent=0
    #allocation2 [shape = 'u8[65536]{0}', space=vmem, size = 0x10000, scoped, tag = 'input window, operand 0']
    #allocation3 [shape = 's32[2]{0}', space=sflag, size = 0x8, scoped, tag = 'scoped memory for tpu_custom_call.1']
    %6 = vsyncpa [#allocation3], 0
    %s7 = scalar_lea.sflag [#allocation3], 1
    %8 = vsyncpa %s7, 0
    loop: start=0, step=1, limit=4
    $region2: #{tpu_custom_call.1} parent=1 // loop_pre_header
      _
    $region3: #{tpu_custom_call.1} parent=1 // loop_header
      %s10 = sphi 0, %s14
      %p11 = scmp.ge.s32.totalorder %s10, 4
      %s17 = sphi 0, %s29
      %s18 = sphi 0, %s25
      %s19 = sphi 0, %s17
      %s20 = sphi 0, %s18
      %s21 = sphi 0, %s19
      %s22 = sphi 0, %s20
      %s34 = sphi 0, %s36
      %s37 = sphi 0, %s34
      %s38 = sphi 0, %s37
      %s54 = sphi 0, %s38
      %s62 = sphi 0, %s64
      %s65 = sphi 0, %s62
      %s66 = sphi 0, %s65
      %s82 = sphi 0, %s66
    $region4: #{tpu_custom_call.1} parent=1 // loop_header_branch
      %13 = sbr.rel (%p11) target = $region8
    $region5: #{tpu_custom_call.1} parent=1 // loop_body
      %s15 = ssub.s32 %s10, 1
      %s16 = ssub.s32 %s10, 2
      %s23 = sadd.s32 1, %s18
      %p24 = scmp.ge.s32.totalorder %s23, 1
      %s25 = scalar_select %p24, 0, %s23
      %s26 = sadd.s32 1, %s17
      %s27 = scalar_select %p24, %s26, %s17
      %p28 = scmp.ge.s32.totalorder %s27, 2
      %s29 = scalar_select %p28, 0, %s27
      %s30 = ssub.s32 %s17, %s29
      %s31 = ssub.s32 %s18, %s25
      %s32 = sor.u32 %s30, %s31
      %p33 = scmp.eq.s32.totalorder %s32, 0
      %s35 = sadd.s32 %s34, 1
      %s36 = scalar_select %p33, %s34, %s35
      %p39 = pneg %p33
      %p40 = scmp.eq.s32.totalorder %s10, 1
      %p41 = por %p39, %p40
      %p42 = scmp.ne.s32.totalorder %s34, %s37
      %p43 = scmp.eq.s32.totalorder %s10, 0
      %p44 = por %p42, %p43
      %p45 = scmp.ne.s32.totalorder %s34, %s37
      %p46 = scmp.eq.s32.totalorder %s15, 1
      %p47 = por %p45, %p46
      %p48 = scmp.ne.s32.totalorder %s37, %s38
      %p49 = scmp.eq.s32.totalorder %s15, 0
      %p50 = por %p48, %p49
      %p51 = scmp.ne.s32.totalorder %s37, %s38
      %p52 = scmp.eq.s32.totalorder %s16, 1
      %p53 = por %p51, %p52
      %p55 = scmp.ne.s32.totalorder %s38, %s54
      %p56 = scmp.eq.s32.totalorder %s16, 0
      %p57 = por %p55, %p56
      %s58 = ssub.s32 %s17, %s29
      %s59 = ssub.s32 %s18, %s25
      %s60 = sor.u32 %s58, %s59
      %p61 = scmp.eq.s32.totalorder %s60, 0
      %s63 = sadd.s32 %s62, 1
      %s64 = scalar_select %p61, %s62, %s63
      %p67 = pneg %p61
      %p68 = scmp.eq.s32.totalorder %s10, 1
      %p69 = por %p67, %p68
      %p70 = scmp.ne.s32.totalorder %s62, %s65
      %p71 = scmp.eq.s32.totalorder %s10, 0
      %p72 = por %p70, %p71
      %p73 = scmp.ne.s32.totalorder %s62, %s65
      %p74 = scmp.eq.s32.totalorder %s15, 1
      %p75 = por %p73, %p74
      %p76 = scmp.ne.s32.totalorder %s65, %s66
      %p77 = scmp.eq.s32.totalorder %s15, 0
      %p78 = por %p76, %p77
      %p79 = scmp.ne.s32.totalorder %s65, %s66
      %p80 = scmp.eq.s32.totalorder %s16, 1
      %p81 = por %p79, %p80
      %p83 = scmp.ne.s32.totalorder %s66, %s82
      %p84 = scmp.eq.s32.totalorder %s16, 0
      %p85 = por %p83, %p84
      %p86 = scmp.le.s32.totalorder 1, %s10
      %p87 = scmp.lt.s32.totalorder %s10, 3
      %p88 = pnand %p86, %p87
      %p89 = pneg %p88
      // Predicated region
      $region9: #{tpu_custom_call.1} parent=5 // pred_check
        _
      $region10: #{tpu_custom_call.1} parent=5 // pred_check_branch
        %91 = sbr.rel (%p88) target = $region12
      $region11: #{tpu_custom_call.1} parent=5 // pred_region
        %s92 = ssub.s32 %s10, 1
      $region12: #{tpu_custom_call.1} parent=5 // pred_fallthru
        _
      %p93 = scmp.lt.s32.totalorder %s10, 2
      // Predicated region
      $region13: #{tpu_custom_call.1} parent=5 // pred_check
        %p94 = pneg %p93
      $region14: #{tpu_custom_call.1} parent=5 // pred_check_branch
        %96 = sbr.rel (%p94) target = $region16
      $region15: #{tpu_custom_call.1} parent=5 // pred_region
        // Predicated region
        $region17: #{tpu_custom_call.1} parent=15 // pred_check
          %p97 = pneg %p44
        $region18: #{tpu_custom_call.1} parent=15 // pred_check_branch
          %99 = sbr.rel (%p97) target = $region20
        $region19: #{tpu_custom_call.1} parent=15 // pred_region
          %s100 = sand.u32 %s34, 1
          %s101 = scalar_lea.sflag [#allocation3], %s100
          %s102 = sand.u32 %s34, 1
          %s103 = smul.addr %s102, 64
          %s104 = scalar_lea.vmem [#allocation2], %s103
          %s105 = smul.u32 4, %s18
          %s107 = ssub.s32 1024, 1024
          %108 = vsyncadd %s101, %s107
          %s109 = smul.addr %s105, 2
          %s110 = smul.addr %s17, 8
          %s111 = sadd.s32 %s109, %s110
          %s112 = smul.addr %s111, 128
          %s113 = scalar_lea.hbm %s0, %s112
          %s114 = sshll.u32 %s104, 4
          %s115 = int_to_ptr.vmem [resolvable:$true] %s114
          %120 = dma.hbm_to_vmem [thread:$0]  %s113, 1024, %s115, %s101, 128, 128, 8
        $region20: #{tpu_custom_call.1} parent=15 // pred_fallthru
          _
      $region16: #{tpu_custom_call.1} parent=5 // pred_fallthru
        _
      %p121 = scmp.le.s32.totalorder 1, %s10
      %p122 = scmp.lt.s32.totalorder %s10, 3
      %p123 = pnand %p121, %p122
      %p124 = pneg %p123
      // Predicated region
      $region21: #{tpu_custom_call.1} parent=5 // pred_check
        _
      $region22: #{tpu_custom_call.1} parent=5 // pred_check_branch
        %126 = sbr.rel (%p123) target = $region24
      $region23: #{tpu_custom_call.1} parent=5 // pred_region
        %s127 = ssub.s32 %s10, 1
        %s128 = sand.u32 %s37, 1
        %s129 = scalar_lea.sflag [#allocation3], %s128
        %s130 = sand.u32 %s37, 1
        %s131 = smul.addr %s130, 64
        %s132 = scalar_lea.vmem [#allocation2], %s131
        // Predicated region
        $region25: #{tpu_custom_call.1} parent=23 // pred_check
          %p133 = pneg %p50
        $region26: #{tpu_custom_call.1} parent=23 // pred_check_branch
          %135 = sbr.rel (%p133) target = $region28
        $region27: #{tpu_custom_call.1} parent=23 // pred_region
          %136 = dma.done %s129, 1024
        $region28: #{tpu_custom_call.1} parent=23 // pred_fallthru
          _
        %s137 = sand.u32 %s37, 1
        %s138 = scalar_lea.sflag [#allocation3], %s137
        %s139 = sand.u32 %s37, 1
        %s140 = smul.addr %s139, 64
        %s141 = scalar_lea.vmem [#allocation2], %s140
        %p142 = pneg %p50
        %p143 = pneg %p47
        %p144 = pneg %p78
        %p145 = pneg %p75
        %s146 = smul.u32 4, %s20
        %p147 = scmp.lt.s32.totalorder %s19, 1
        %s148 = scalar_select %p147, %s19, 1
        %p149 = scmp.lt.s32.totalorder %s146, 3
        %s150 = scalar_select %p149, %s146, 3
        %s151 = smul.addr %s150, 3
        %s152 = smul.addr %s148, 12
        %s153 = sadd.s32 %s151, %s152
        %s154 = smul.addr %s153, 8
        %s155 = scalar_lea.vmem %s1, %s154
        %s156 = smul.u32 4, %s20
        %s157 = smul.u32 4, %s20
        %p158 = scmp.lt.s32.totalorder %s19, 1
        %s159 = scalar_select %p158, %s19, 1
        %p160 = scmp.lt.s32.totalorder %s157, 3
        %s161 = scalar_select %p160, %s157, 3
        %s162 = smul.addr %s161, 3
        %s163 = smul.addr %s159, 12
        %s164 = sadd.s32 %s162, %s163
        %s165 = smul.addr %s164, 8
        %s166 = scalar_lea.vmem %s1, %s165
        %s167 = smul.u32 4, %s20
        %v168 = vld [vmem:[%s132] sm:$0xff]
        %v169 = vld [vmem:[%s132 + $0x8] sm:$0xff]
        %v170 = vld [vmem:[%s132 + $0x10] sm:$0xff]
        %v171 = vld [vmem:[%s132 + $0x18] sm:$0xff]
        %v172 = vld [vmem:[%s132 + $0x20] sm:$0xff]
        %v173 = vld [vmem:[%s132 + $0x28] sm:$0xff]
        %v174 = vld [vmem:[%s132 + $0x30] sm:$0xff]
        %v175 = vld [vmem:[%s132 + $0x38] sm:$0xff]
        %177 = vset.pattern.permute.xlu0 15
        %178 = vperm.xlu0 %177, %v168
        %v179 = vpop.permute.xlu0 %178
        %182 = vset.pattern.permute.xlu0 15
        %183 = vperm.xlu0 %182, %v169
        %v184 = vpop.permute.xlu0 %183
        %187 = vset.pattern.permute.xlu0 15
        %188 = vperm.xlu0 %187, %v170
        %v189 = vpop.permute.xlu0 %188
        %192 = vset.pattern.permute.xlu0 15
        %193 = vperm.xlu0 %192, %v171
        %v194 = vpop.permute.xlu0 %193
        %197 = vset.pattern.permute.xlu0 15
        %198 = vperm.xlu0 %197, %v172
        %v199 = vpop.permute.xlu0 %198
        %202 = vset.pattern.permute.xlu0 15
        %203 = vperm.xlu0 %202, %v173
        %v204 = vpop.permute.xlu0 %203
        %207 = vset.pattern.permute.xlu0 15
        %208 = vperm.xlu0 %207, %v174
        %v209 = vpop.permute.xlu0 %208
        %212 = vset.pattern.permute.xlu0 15
        %213 = vperm.xlu0 %212, %v175
        %v214 = vpop.permute.xlu0 %213
        %216 = vrot.lane.b32.xlu0 %v168, 1
        %v217 = vpop.permute.xlu0 %216
        %218 = vrot.lane.b32.xlu0 %v169, 1
        %v219 = vpop.permute.xlu0 %218
        %220 = vrot.lane.b32.xlu0 %v170, 1
        %v221 = vpop.permute.xlu0 %220
        %222 = vrot.lane.b32.xlu0 %v171, 1
        %v223 = vpop.permute.xlu0 %222
        %224 = vrot.lane.b32.xlu0 %v172, 1
        %v225 = vpop.permute.xlu0 %224
        %226 = vrot.lane.b32.xlu0 %v173, 1
        %v227 = vpop.permute.xlu0 %226
        %228 = vrot.lane.b32.xlu0 %v174, 1
        %v229 = vpop.permute.xlu0 %228
        %230 = vrot.lane.b32.xlu0 %v175, 1
        %v231 = vpop.permute.xlu0 %230
        %vm240 = vcmask 7168
        %v241 = vsel %vm240, %v168, %v217
        %v242 = vsel %vm240, %v169, %v219
        %v243 = vsel %vm240, %v170, %v221
        %v244 = vsel %vm240, %v171, %v223
        %v245 = vsel %vm240, %v172, %v225
        %v246 = vsel %vm240, %v173, %v227
        %v247 = vsel %vm240, %v174, %v229
        %v248 = vsel %vm240, %v175, %v231
        %vm249 = vcmask 138240
        %v250 = vsel %vm249, %v241, %v179
        %v251 = vsel %vm249, %v242, %v184
        %v252 = vsel %vm249, %v243, %v189
        %v253 = vsel %vm249, %v244, %v194
        %v254 = vsel %vm249, %v245, %v199
        %v255 = vsel %vm249, %v246, %v204
        %v256 = vsel %vm249, %v247, %v209
        %v257 = vsel %vm249, %v248, %v214
        %vm258 = vcmask 154624
        %259 = vst.msk [vmem:[%s166 + $0x1] sm:$0xff] %vm258, %v250
        %260 = vst.msk [vmem:[%s166 + $0x9] sm:$0xff] %vm258, %v251
        %261 = vst.msk [vmem:[%s166 + $0x19] sm:$0xff] %vm258, %v252
        %262 = vst.msk [vmem:[%s166 + $0x21] sm:$0xff] %vm258, %v253
        %263 = vst.msk [vmem:[%s166 + $0x31] sm:$0xff] %vm258, %v254
        %264 = vst.msk [vmem:[%s166 + $0x39] sm:$0xff] %vm258, %v255
        %265 = vst.msk [vmem:[%s166 + $0x49] sm:$0xff] %vm258, %v256
        %266 = vst.msk [vmem:[%s166 + $0x51] sm:$0xff] %vm258, %v257
        %v267 = vld [vmem:[%s166 + $0x1] sm:$0x1]
        %v268 = vld [vmem:[%s166 + $0x19] sm:$0x1]
        %v269 = vld [vmem:[%s166 + $0x31] sm:$0x1]
        %v270 = vld [vmem:[%s166 + $0x49] sm:$0x1]
        %vm271 = vcmask 147456
        %272 = vst.msk [vmem:[%s166] sm:$0x1] %vm271, %v267
        %273 = vst.msk [vmem:[%s166 + $0x18] sm:$0x1] %vm271, %v268
        %274 = vst.msk [vmem:[%s166 + $0x30] sm:$0x1] %vm271, %v269
        %275 = vst.msk [vmem:[%s166 + $0x48] sm:$0x1] %vm271, %v270
        %v276 = vld [vmem:[%s166 + $0x10] sm:$0x1]
        %v277 = vld [vmem:[%s166 + $0x28] sm:$0x1]
        %v278 = vld [vmem:[%s166 + $0x40] sm:$0x1]
        %v279 = vld [vmem:[%s166 + $0x58] sm:$0x1]
        %v280 = vlaneseq
        %v281 = vshrl.u32 %v280, 7
        %v282 = vsub.s32 0, %v281
        %v283 = vrot.slane %v276, %v282
        %v284 = vlaneseq
        %v285 = vshrl.u32 %v284, 7
        %v286 = vsub.s32 0, %v285
        %v287 = vrot.slane %v277, %v286
        %v288 = vlaneseq
        %v289 = vshrl.u32 %v288, 7
        %v290 = vsub.s32 0, %v289
        %v291 = vrot.slane %v278, %v290
        %v292 = vlaneseq
        %v293 = vshrl.u32 %v292, 7
        %v294 = vsub.s32 0, %v293
        %v295 = vrot.slane %v279, %v294
        %vm296 = vcmask 148480
        %297 = vst.msk [vmem:[%s166 + $0x11] sm:$0x3] %vm296, %v283
        %298 = vst.msk [vmem:[%s166 + $0x29] sm:$0x3] %vm296, %v287
        %299 = vst.msk [vmem:[%s166 + $0x41] sm:$0x3] %vm296, %v291
        %300 = vst.msk [vmem:[%s166 + $0x59] sm:$0x3] %vm296, %v295
        %s301 = smul.u32 4, %s20
        %p302 = scmp.lt.s32.totalorder %s19, 1
        %s303 = scalar_select %p302, %s19, 1
        %p304 = scmp.lt.s32.totalorder %s301, 3
        %s305 = scalar_select %p304, %s301, 3
        %s306 = smul.addr %s305, 3
        %s307 = smul.addr %s303, 12
        %s308 = sadd.s32 %s306, %s307
        %s309 = smul.addr %s308, 8
        %s310 = scalar_lea.vmem %s1, %s309
        // Predicated region
        $region29: #{tpu_custom_call.1} parent=23 // pred_check
          %p311 = pneg %p75
        $region30: #{tpu_custom_call.1} parent=23 // pred_check_branch
          %313 = sbr.rel (%p311) target = $region32
        $region31: #{tpu_custom_call.1} parent=23 // pred_region
          %s314 = smul.u32 4, %s20
        $region32: #{tpu_custom_call.1} parent=23 // pred_fallthru
          _
      $region24: #{tpu_custom_call.1} parent=5 // pred_fallthru
        _
      %p315 = scmp.le.s32.totalorder 2, %s10
      // Predicated region
      $region33: #{tpu_custom_call.1} parent=5 // pred_check
        %p316 = pneg %p315
      $region34: #{tpu_custom_call.1} parent=5 // pred_check_branch
        %318 = sbr.rel (%p316) target = $region36
      $region35: #{tpu_custom_call.1} parent=5 // pred_region
        %s319 = ssub.s32 %s10, 2
        // Predicated region
        $region37: #{tpu_custom_call.1} parent=35 // pred_check
          %p320 = pneg %p81
        $region38: #{tpu_custom_call.1} parent=35 // pred_check_branch
          %322 = sbr.rel (%p320) target = $region40
        $region39: #{tpu_custom_call.1} parent=35 // pred_region
          %s323 = smul.u32 4, %s22
          %p324 = scmp.lt.s32.totalorder %s21, 1
          %s325 = scalar_select %p324, %s21, 1
          %p326 = scmp.lt.s32.totalorder %s323, 3
          %s327 = scalar_select %p326, %s323, 3
          %s328 = smul.addr %s327, 3
          %s329 = smul.addr %s325, 12
          %s330 = sadd.s32 %s328, %s329
          %s331 = smul.addr %s330, 8
          %s332 = scalar_lea.vmem %s1, %s331
        $region40: #{tpu_custom_call.1} parent=35 // pred_fallthru
          _
      $region36: #{tpu_custom_call.1} parent=5 // pred_fallthru
        _
    $region6: #{tpu_custom_call.1} parent=1 // loop_footer
      %s14 = sadd.s32 1, %s10
    $region7: #{tpu_custom_call.1} parent=1 // loop_footer_branch
      %9 = sbr.rel target = $region3
    $region8: #{tpu_custom_call.1} parent=1 // loop_exit
      _
    %333 = vsyncpa [#allocation3], 1
    %s334 = scalar_lea.sflag [#allocation3], 1
    %335 = vsyncpa %s334, 1

</llo_original>
